<compile_context>
chip_gen: v6e
topology: v6e:2x2x1
jax: 0.10.0
libtpu: 0.0.40
codegen_flags: <defaults>
</compile_context>

<pallas_src>
import jax
import jax.numpy as jnp
from jax.experimental import pallas as pl
from jax.experimental.pallas import tpu as pltpu


def _pair_few_shot_kernel(
    xT_ref, yT_ref, fxT_ref, fyT_ref,      # streamed, transposed [D, TB] blocks
    xm_ref, ym_ref, valid_ref,             # streamed (1, TB) 0/1 masks + valid flag
    fx2_ref, fy2_ref, pos2_ref,            # resident (2, De) rows 0/1
    ms_ref, mc_ref, ps_ref,                # (1, 128) per-tile partial outputs
):
    f32 = jnp.float32

    # Upcast right after load (bf16 inputs supported; accumulation in f32).
    x = xT_ref[...].astype(f32)            # (Df, TB)
    y = yT_ref[...].astype(f32)
    fx = fxT_ref[...].astype(f32)          # (De, TB)
    fy = fyT_ref[...].astype(f32)

    # distance_feature / distance_embedding per pair: sublane-axis reduce -> (1, TB)
    dxy = x - y
    dist_feat = jnp.sqrt(jnp.sum(dxy * dxy, axis=0, keepdims=True))
    dfe = fx - fy
    dist_emb = jnp.sqrt(jnp.sum(dfe * dfe, axis=0, keepdims=True))

    # mask = (distance_feature > 0) & (distance_feature < 0.8)
    mask = (dist_feat > 0.0) & (dist_feat < 0.8)
    safe = jnp.where(mask, dist_feat, 1.0)             # avoid 0-division on masked rows
    diff = dist_emb - dist_feat
    term = diff * diff * pl.reciprocal(safe, approx=False)   # divide on the EUP slot

    masked_sum = jnp.sum(jnp.where(mask, term, 0.0), axis=1, keepdims=True)   # (1,1)
    masked_cnt = jnp.sum(jnp.where(mask, 1.0, 0.0), axis=1, keepdims=True)    # (1,1)

    # Penalty base distances from rows 0/1 of f_x, f_y, positions (tiny, recomputed
    # per tile -- negligible vs the streamed traffic).
    fx2 = fx2_ref[...].astype(f32)          # (2, De)
    fy2 = fy2_ref[...].astype(f32)
    pos2 = pos2_ref[...].astype(f32)

    def _rdist(a, b):                       # (1, De), (1, De) -> (1, 1)
        d = a - b
        return jnp.sqrt(jnp.sum(d * d, axis=1, keepdims=True))

    d0x = _rdist(fx2[0:1, :], pos2[0:1, :])   # ||f_x[0] - positions[0]||
    d1x = _rdist(fx2[1:2, :], pos2[1:2, :])   # ||f_x[1] - positions[1]||
    d00 = _rdist(fy2[0:1, :], pos2[0:1, :])   # ||f_y[0] - positions[0]||
    d11 = _rdist(fy2[1:2, :], pos2[1:2, :])   # ||f_y[1] - positions[1]||
    d01 = _rdist(fy2[0:1, :], pos2[1:2, :])   # ||f_y[0] - positions[1]||
    d10 = _rdist(fy2[1:2, :], pos2[0:1, :])   # ||f_y[1] - positions[0]||

    xm = xm_ref[...]                         # (1, TB) in {0, 1}
    ym = ym_ref[...]
    vv = valid_ref[...]                      # 0 on padded rows

    # penalty_x[i] = ||f_x[x_mask[i]] - positions[x_mask[i]]||
    # penalty_y[i] = ||f_y[x_mask[i]] - positions[y_mask[i]]||
    #   (sic: f_y is indexed with x_mask -- replicates the original PyTorch module)
    pen_x = xm * d1x + (1.0 - xm) * d0x
    pen_y = xm * (ym * d11 + (1.0 - ym) * d10) + (1.0 - xm) * (ym * d01 + (1.0 - ym) * d00)
    penalty_sum = jnp.sum(vv * (pen_x + pen_y), axis=1, keepdims=True)        # (1,1)

    # Lane-dense (unmasked) partial-sum stores; final reduce happens in the wrapper.
    ms_ref[...] = jnp.broadcast_to(masked_sum, (1, 128))
    mc_ref[...] = jnp.broadcast_to(masked_cnt, (1, 128))
    ps_ref[...] = jnp.broadcast_to(penalty_sum, (1, 128))


def pair_few_shot_loss(x, y, f_x, f_y, target, data_idx, positions,
                       alpha=1.0, size_average=True, block_b=128):
    """JAX/Pallas equivalent of PairFewShotLoss.forward (size_average=True path).

    block_b: pairs per tile (multiple of 128). Raise towards 512-2048 for large
    problems, keeping 2 (double-buffer) * (2*Df + 2*De) * block_b * itemsize within
    the per-generation VMEM budget (64 MiB on v7x, 128 MiB on v5e/v6e).
    """
    B, Df = x.shape
    De = f_x.shape[1]
    assert y.shape == (B, Df) and f_y.shape == (B, De)
    assert B >= 2 and positions.shape[0] >= 2, "0/1 integer indexing needs >=2 rows"
    f32 = jnp.float32

    # Host-side Python loop of the original module, vectorized:
    x_mask = jnp.isin(target[:, 0], data_idx)
    y_mask = jnp.isin(target[:, 1], data_idx)
    available = jnp.sum(x_mask.astype(jnp.int32)) + jnp.sum(y_mask.astype(jnp.int32))

    TB = int(block_b)
    assert TB % 128 == 0, "block_b must be a multiple of 128 (lane width)"
    num_tiles = (B + TB - 1) // TB
    Bp = num_tiles * TB
    pad = Bp - B

    # Transpose so the pair axis sits on lanes; zero-pad the ragged tail
    # (padded pairs: dist_feat == 0 -> masked out; valid == 0 -> no penalty).
    def pad_t(a):                                   # [B, D] -> [D, Bp]
        return jnp.pad(a, ((0, pad), (0, 0))).T

    xT, yT = pad_t(x), pad_t(y)
    fxT, fyT = pad_t(f_x), pad_t(f_y)

    def pad_row(v):                                 # [B] -> [1, Bp] f32
        return jnp.pad(v.astype(f32), (0, pad)).reshape(1, Bp)

    xm = pad_row(x_mask.astype(f32))
    ym = pad_row(y_mask.astype(f32))
    valid = pad_row(jnp.ones((B,), f32))

    fx2, fy2, pos2 = f_x[0:2], f_y[0:2], positions[0:2]

    # Scoped-VMEM budget: double-buffered streams + resident constants + headroom.
    itemsize = jnp.dtype(x.dtype).itemsize
    stream_bytes = 2 * TB * ((2 * Df + 2 * De) * itemsize + 3 * 4)
    fixed_bytes = 3 * 2 * De * 4 + 3 * 2 * 128 * 4
    vmem_limit = int(min(48 * 2**20, max(16 * 2**20, 4 * (stream_bytes + fixed_bytes))))

    bmap = lambda i: (0, i)     # streamed blocks walk the lane (pair) axis
    cmap = lambda i: (0, 0)     # resident constants

    ms, mc, ps = pl.pallas_call(
        _pair_few_shot_kernel,
        grid=(num_tiles,),
        in_specs=[
            pl.BlockSpec((Df, TB), bmap),   # x^T
            pl.BlockSpec((Df, TB), bmap),   # y^T
            pl.BlockSpec((De, TB), bmap),   # f_x^T
            pl.BlockSpec((De, TB), bmap),   # f_y^T
            pl.BlockSpec((1, TB), bmap),    # x_mask
            pl.BlockSpec((1, TB), bmap),    # y_mask
            pl.BlockSpec((1, TB), bmap),    # valid
            pl.BlockSpec((2, De), cmap),    # f_x[0:2]
            pl.BlockSpec((2, De), cmap),    # f_y[0:2]
            pl.BlockSpec((2, De), cmap),    # positions[0:2]
        ],
        out_specs=(
            pl.BlockSpec((1, 128), lambda i: (0, i)),
            pl.BlockSpec((1, 128), lambda i: (0, i)),
            pl.BlockSpec((1, 128), lambda i: (0, i)),
        ),
        out_shape=(
            jax.ShapeDtypeStruct((1, num_tiles * 128), f32),
            jax.ShapeDtypeStruct((1, num_tiles * 128), f32),
            jax.ShapeDtypeStruct((1, num_tiles * 128), f32),
        ),
        compiler_params=pltpu.CompilerParams(
            dimension_semantics=("parallel",),
            vmem_limit_bytes=vmem_limit,
        ),
    )(xT, yT, fxT, fyT, xm, ym, valid, fx2, fy2, pos2)

    # Final combine (cheap, done in plain JAX as per the review).
    masked_sum = jnp.sum(ms.reshape(num_tiles, 128)[:, 0])
    masked_cnt = jnp.sum(mc.reshape(num_tiles, 128)[:, 0])
    penalty_sum = jnp.sum(ps.reshape(num_tiles, 128)[:, 0])

    masked_mean = masked_sum / masked_cnt       # NaN if mask is empty (matches torch .mean())
    avail_f = available.astype(f32)
    # NOTE: when available_data == 0 the original crashes (int 0 has no .mean());
    # here we return a zero penalty instead.
    penalty_mean = jnp.where(avail_f > 0.0, penalty_sum / (avail_f * B), 0.0)

    if size_average:
        return masked_mean + alpha * penalty_mean
    # TODO(synk): size_average=False references an undefined `losses` in the original
    # PyTorch module (it would crash); not reproduced.
    raise NotImplementedError("size_average=False is broken in the reference module")


def _reference_loss(x, y, f_x, f_y, target, data_idx, positions, alpha=1.0):
    """Pure-jnp reference mirroring the PyTorch module, for validation."""
    df = jnp.sqrt(jnp.sum((x - y) ** 2, axis=1))
    de = jnp.sqrt(jnp.sum((f_x - f_y) ** 2, axis=1))
    mask = (df > 0.0) & (df < 0.8)
    term = (de - df) ** 2 / jnp.where(mask, df, 1.0)
    masked_mean = jnp.sum(jnp.where(mask, term, 0.0)) / jnp.sum(mask)
    x_mask = jnp.isin(target[:, 0], data_idx).astype(jnp.int32)
    y_mask = jnp.isin(target[:, 1], data_idx).astype(jnp.int32)
    avail = (jnp.sum(x_mask) + jnp.sum(y_mask)).astype(jnp.float32)
    px = jnp.sqrt(jnp.sum((f_x[x_mask] - positions[x_mask]) ** 2, axis=1))
    py = jnp.sqrt(jnp.sum((f_y[x_mask] - positions[y_mask]) ** 2, axis=1))
    penalty_mean = jnp.mean((px + py) / avail)
    return masked_mean + alpha * penalty_mean


if __name__ == "__main__":
    # pairs, feature dim, embedding dim, #locations  (B deliberately not a multiple
    # of the tile so the ragged-tail / multi-tile path is exercised: 3 tiles of 128)
    B, Df, De, L = 300, 32, 16, 4
    key = jax.random.PRNGKey(0)
    k1, k2, k3, k4, k5, k6 = jax.random.split(key, 6)

    x = jax.random.uniform(k1, (B, Df), dtype=jnp.float32)
    # Most pairs land with ||x-y|| ~ 0.28 (inside (0, 0.8)); every 5th pair is
    # pushed outside the 0.8 threshold so the mask path is exercised.
    noise_scale = jnp.where(jnp.arange(B) % 5 == 0, 0.3, 0.05)[:, None]
    y = x + noise_scale * jax.random.normal(k2, (B, Df), dtype=jnp.float32)
    f_x = 0.1 * jax.random.normal(k3, (B, De), dtype=jnp.float32)
    f_y = f_x + 0.05 * jax.random.normal(k4, (B, De), dtype=jnp.float32)
    target = jax.random.randint(k5, (B, 2), 0, 6, dtype=jnp.int32)   # class-id pairs

    # Deterministic "module parameters": data_idx set and location table.
    data_idx = jnp.array([0, 1, 2], dtype=jnp.int32)
    positions = 0.1 * jax.random.normal(k6, (L, De), dtype=jnp.float32)
    alpha = 1.0

    loss = pair_few_shot_loss(x, y, f_x, f_y, target, data_idx, positions,
                              alpha, block_b=128)
    loss = jax.block_until_ready(loss)

    ref = _reference_loss(x, y, f_x, f_y, target, data_idx, positions, alpha)
    assert jnp.isfinite(loss), loss
    assert jnp.allclose(loss, ref, rtol=1e-4, atol=1e-5), (loss, ref)

    print("KERNEL_OK")
</pallas_src>

<mosaic_0001>
module attributes {stable_mosaic.version = 11 : i64} {
  func.func @_pair_few_shot_kernel(%arg0: i32, %arg1: memref<32x128xf32, #tpu.memory_space<vmem>>, %arg2: memref<32x128xf32, #tpu.memory_space<vmem>>, %arg3: memref<16x128xf32, #tpu.memory_space<vmem>>, %arg4: memref<16x128xf32, #tpu.memory_space<vmem>>, %arg5: memref<1x128xf32, #tpu.memory_space<vmem>>, %arg6: memref<1x128xf32, #tpu.memory_space<vmem>>, %arg7: memref<1x128xf32, #tpu.memory_space<vmem>>, %arg8: memref<2x16xf32, #tpu.memory_space<vmem>>, %arg9: memref<2x16xf32, #tpu.memory_space<vmem>>, %arg10: memref<2x16xf32, #tpu.memory_space<vmem>>, %arg11: memref<1x128xf32, #tpu.memory_space<vmem>>, %arg12: memref<1x128xf32, #tpu.memory_space<vmem>>, %arg13: memref<1x128xf32, #tpu.memory_space<vmem>>) attributes {dimension_semantics = [#tpu.dimension_semantics<parallel>], iteration_bounds = array<i64: 3>, scalar_prefetch = 0 : i64, scratch_operands = 0 : i64, tpu.core_type = #tpu.core_type<tc>, window_params = [{transform_indices = @transform_0, window_bounds = array<i64: 32, 128>}, {transform_indices = @transform_1, window_bounds = array<i64: 32, 128>}, {transform_indices = @transform_2, window_bounds = array<i64: 16, 128>}, {transform_indices = @transform_3, window_bounds = array<i64: 16, 128>}, {transform_indices = @transform_4, window_bounds = array<i64: 1, 128>}, {transform_indices = @transform_5, window_bounds = array<i64: 1, 128>}, {transform_indices = @transform_6, window_bounds = array<i64: 1, 128>}, {pipeline_mode = #tpu.pipeline_mode<synchronous>, transform_indices = @transform_7, window_bounds = array<i64: 2, 16>}, {pipeline_mode = #tpu.pipeline_mode<synchronous>, transform_indices = @transform_8, window_bounds = array<i64: 2, 16>}, {pipeline_mode = #tpu.pipeline_mode<synchronous>, transform_indices = @transform_9, window_bounds = array<i64: 2, 16>}, {transform_indices = @transform_10, window_bounds = array<i64: 1, 128>}, {transform_indices = @transform_11, window_bounds = array<i64: 1, 128>}, {transform_indices = @transform_12, window_bounds = array<i64: 1, 128>}]} {
    %c0 = arith.constant 0 : index
    %c0_0 = arith.constant 0 : index
    %0 = vector.load %arg1[%c0, %c0_0] : memref<32x128xf32, #tpu.memory_space<vmem>>, vector<32x128xf32>
    %c0_1 = arith.constant 0 : index
    %c0_2 = arith.constant 0 : index
    %1 = vector.load %arg2[%c0_1, %c0_2] : memref<32x128xf32, #tpu.memory_space<vmem>>, vector<32x128xf32>
    %c0_3 = arith.constant 0 : index
    %c0_4 = arith.constant 0 : index
    %2 = vector.load %arg3[%c0_3, %c0_4] : memref<16x128xf32, #tpu.memory_space<vmem>>, vector<16x128xf32>
    %c0_5 = arith.constant 0 : index
    %c0_6 = arith.constant 0 : index
    %3 = vector.load %arg4[%c0_5, %c0_6] : memref<16x128xf32, #tpu.memory_space<vmem>>, vector<16x128xf32>
    %4 = arith.subf %0, %1 : vector<32x128xf32>
    %5 = arith.mulf %4, %4 : vector<32x128xf32>
    %cst = arith.constant dense<0.000000e+00> : vector<128xf32>
    %6 = vector.multi_reduction <add>, %5, %cst [0] : vector<32x128xf32> to vector<128xf32>
    %7 = vector.shape_cast %6 : vector<128xf32> to vector<1x128xf32>
    %8 = math.sqrt %7 : vector<1x128xf32>
    %9 = arith.subf %2, %3 : vector<16x128xf32>
    %10 = arith.mulf %9, %9 : vector<16x128xf32>
    %cst_7 = arith.constant dense<0.000000e+00> : vector<128xf32>
    %11 = vector.multi_reduction <add>, %10, %cst_7 [0] : vector<16x128xf32> to vector<128xf32>
    %12 = vector.shape_cast %11 : vector<128xf32> to vector<1x128xf32>
    %13 = math.sqrt %12 : vector<1x128xf32>
    %cst_8 = arith.constant 0.000000e+00 : f32
    %14 = vector.broadcast %cst_8 : f32 to vector<1x128xf32>
    %15 = arith.cmpf ogt, %8, %14 : vector<1x128xf32>
    %cst_9 = arith.constant 8.000000e-01 : f32
    %16 = vector.broadcast %cst_9 : f32 to vector<1x128xf32>
    %17 = arith.cmpf olt, %8, %16 : vector<1x128xf32>
    %18 = arith.andi %15, %17 : vector<1x128xi1>
    %cst_10 = arith.constant 1.000000e+00 : f32
    %19 = vector.broadcast %cst_10 : f32 to vector<1x128xf32>
    %20 = arith.select %18, %8, %19 : vector<1x128xi1>, vector<1x128xf32>
    %21 = arith.subf %13, %8 : vector<1x128xf32>
    %22 = arith.mulf %21, %21 : vector<1x128xf32>
    %23 = tpu.reciprocal %20 : vector<1x128xf32> -> vector<1x128xf32>
    %24 = arith.mulf %22, %23 : vector<1x128xf32>
    %cst_11 = arith.constant 0.000000e+00 : f32
    %25 = vector.broadcast %cst_11 : f32 to vector<1x128xf32>
    %26 = arith.select %18, %24, %25 : vector<1x128xi1>, vector<1x128xf32>
    %cst_12 = arith.constant dense<0.000000e+00> : vector<1xf32>
    %27 = vector.multi_reduction <add>, %26, %cst_12 [1] : vector<1x128xf32> to vector<1xf32>
    %28 = vector.shape_cast %27 : vector<1xf32> to vector<1x1xf32>
    %cst_13 = arith.constant 1.000000e+00 : f32
    %cst_14 = arith.constant 0.000000e+00 : f32
    %29 = vector.broadcast %cst_13 : f32 to vector<1x128xf32>
    %30 = vector.broadcast %cst_14 : f32 to vector<1x128xf32>
    %31 = arith.select %18, %29, %30 : vector<1x128xi1>, vector<1x128xf32>
    %cst_15 = arith.constant dense<0.000000e+00> : vector<1xf32>
    %32 = vector.multi_reduction <add>, %31, %cst_15 [1] : vector<1x128xf32> to vector<1xf32>
    %33 = vector.shape_cast %32 : vector<1xf32> to vector<1x1xf32>
    %c0_16 = arith.constant 0 : index
    %c0_17 = arith.constant 0 : index
    %34 = vector.load %arg8[%c0_16, %c0_17] : memref<2x16xf32, #tpu.memory_space<vmem>>, vector<2x16xf32>
    %c0_18 = arith.constant 0 : index
    %c0_19 = arith.constant 0 : index
    %35 = vector.load %arg9[%c0_18, %c0_19] : memref<2x16xf32, #tpu.memory_space<vmem>>, vector<2x16xf32>
    %c0_20 = arith.constant 0 : index
    %c0_21 = arith.constant 0 : index
    %36 = vector.load %arg10[%c0_20, %c0_21] : memref<2x16xf32, #tpu.memory_space<vmem>>, vector<2x16xf32>
    %37 = vector.extract_strided_slice %34 {offsets = [0, 0], sizes = [1, 16], strides = [1, 1]} : vector<2x16xf32> to vector<1x16xf32>
    %38 = vector.extract_strided_slice %36 {offsets = [0, 0], sizes = [1, 16], strides = [1, 1]} : vector<2x16xf32> to vector<1x16xf32>
    %39 = arith.subf %37, %38 : vector<1x16xf32>
    %40 = arith.mulf %39, %39 : vector<1x16xf32>
    %cst_22 = arith.constant dense<0.000000e+00> : vector<1xf32>
    %41 = vector.multi_reduction <add>, %40, %cst_22 [1] : vector<1x16xf32> to vector<1xf32>
    %42 = vector.shape_cast %41 : vector<1xf32> to vector<1x1xf32>
    %43 = math.sqrt %42 : vector<1x1xf32>
    %44 = vector.extract_strided_slice %34 {offsets = [1, 0], sizes = [1, 16], strides = [1, 1]} : vector<2x16xf32> to vector<1x16xf32>
    %45 = vector.extract_strided_slice %36 {offsets = [1, 0], sizes = [1, 16], strides = [1, 1]} : vector<2x16xf32> to vector<1x16xf32>
    %46 = arith.subf %44, %45 : vector<1x16xf32>
    %47 = arith.mulf %46, %46 : vector<1x16xf32>
    %cst_23 = arith.constant dense<0.000000e+00> : vector<1xf32>
    %48 = vector.multi_reduction <add>, %47, %cst_23 [1] : vector<1x16xf32> to vector<1xf32>
    %49 = vector.shape_cast %48 : vector<1xf32> to vector<1x1xf32>
    %50 = math.sqrt %49 : vector<1x1xf32>
    %51 = vector.extract_strided_slice %35 {offsets = [0, 0], sizes = [1, 16], strides = [1, 1]} : vector<2x16xf32> to vector<1x16xf32>
    %52 = vector.extract_strided_slice %36 {offsets = [0, 0], sizes = [1, 16], strides = [1, 1]} : vector<2x16xf32> to vector<1x16xf32>
    %53 = arith.subf %51, %52 : vector<1x16xf32>
    %54 = arith.mulf %53, %53 : vector<1x16xf32>
    %cst_24 = arith.constant dense<0.000000e+00> : vector<1xf32>
    %55 = vector.multi_reduction <add>, %54, %cst_24 [1] : vector<1x16xf32> to vector<1xf32>
    %56 = vector.shape_cast %55 : vector<1xf32> to vector<1x1xf32>
    %57 = math.sqrt %56 : vector<1x1xf32>
    %58 = vector.extract_strided_slice %35 {offsets = [1, 0], sizes = [1, 16], strides = [1, 1]} : vector<2x16xf32> to vector<1x16xf32>
    %59 = vector.extract_strided_slice %36 {offsets = [1, 0], sizes = [1, 16], strides = [1, 1]} : vector<2x16xf32> to vector<1x16xf32>
    %60 = arith.subf %58, %59 : vector<1x16xf32>
    %61 = arith.mulf %60, %60 : vector<1x16xf32>
    %cst_25 = arith.constant dense<0.000000e+00> : vector<1xf32>
    %62 = vector.multi_reduction <add>, %61, %cst_25 [1] : vector<1x16xf32> to vector<1xf32>
    %63 = vector.shape_cast %62 : vector<1xf32> to vector<1x1xf32>
    %64 = math.sqrt %63 : vector<1x1xf32>
    %65 = vector.extract_strided_slice %35 {offsets = [0, 0], sizes = [1, 16], strides = [1, 1]} : vector<2x16xf32> to vector<1x16xf32>
    %66 = vector.extract_strided_slice %36 {offsets = [1, 0], sizes = [1, 16], strides = [1, 1]} : vector<2x16xf32> to vector<1x16xf32>
    %67 = arith.subf %65, %66 : vector<1x16xf32>
    %68 = arith.mulf %67, %67 : vector<1x16xf32>
    %cst_26 = arith.constant dense<0.000000e+00> : vector<1xf32>
    %69 = vector.multi_reduction <add>, %68, %cst_26 [1] : vector<1x16xf32> to vector<1xf32>
    %70 = vector.shape_cast %69 : vector<1xf32> to vector<1x1xf32>
    %71 = math.sqrt %70 : vector<1x1xf32>
    %72 = vector.extract_strided_slice %35 {offsets = [1, 0], sizes = [1, 16], strides = [1, 1]} : vector<2x16xf32> to vector<1x16xf32>
    %73 = vector.extract_strided_slice %36 {offsets = [0, 0], sizes = [1, 16], strides = [1, 1]} : vector<2x16xf32> to vector<1x16xf32>
    %74 = arith.subf %72, %73 : vector<1x16xf32>
    %75 = arith.mulf %74, %74 : vector<1x16xf32>
    %cst_27 = arith.constant dense<0.000000e+00> : vector<1xf32>
    %76 = vector.multi_reduction <add>, %75, %cst_27 [1] : vector<1x16xf32> to vector<1xf32>
    %77 = vector.shape_cast %76 : vector<1xf32> to vector<1x1xf32>
    %78 = math.sqrt %77 : vector<1x1xf32>
    %c0_28 = arith.constant 0 : index
    %c0_29 = arith.constant 0 : index
    %79 = vector.load %arg5[%c0_28, %c0_29] : memref<1x128xf32, #tpu.memory_space<vmem>>, vector<1x128xf32>
    %c0_30 = arith.constant 0 : index
    %c0_31 = arith.constant 0 : index
    %80 = vector.load %arg6[%c0_30, %c0_31] : memref<1x128xf32, #tpu.memory_space<vmem>>, vector<1x128xf32>
    %c0_32 = arith.constant 0 : index
    %c0_33 = arith.constant 0 : index
    %81 = vector.load %arg7[%c0_32, %c0_33] : memref<1x128xf32, #tpu.memory_space<vmem>>, vector<1x128xf32>
    %82 = vector.broadcast %50 : vector<1x1xf32> to vector<1x128xf32>
    %83 = arith.mulf %79, %82 : vector<1x128xf32>
    %cst_34 = arith.constant 1.000000e+00 : f32
    %84 = vector.broadcast %cst_34 : f32 to vector<1x128xf32>
    %85 = arith.subf %84, %79 : vector<1x128xf32>
    %86 = vector.broadcast %43 : vector<1x1xf32> to vector<1x128xf32>
    %87 = arith.mulf %85, %86 : vector<1x128xf32>
    %88 = arith.addf %83, %87 : vector<1x128xf32>
    %89 = vector.broadcast %64 : vector<1x1xf32> to vector<1x128xf32>
    %90 = arith.mulf %80, %89 : vector<1x128xf32>
    %cst_35 = arith.constant 1.000000e+00 : f32
    %91 = vector.broadcast %cst_35 : f32 to vector<1x128xf32>
    %92 = arith.subf %91, %80 : vector<1x128xf32>
    %93 = vector.broadcast %78 : vector<1x1xf32> to vector<1x128xf32>
    %94 = arith.mulf %92, %93 : vector<1x128xf32>
    %95 = arith.addf %90, %94 : vector<1x128xf32>
    %96 = arith.mulf %79, %95 : vector<1x128xf32>
    %cst_36 = arith.constant 1.000000e+00 : f32
    %97 = vector.broadcast %cst_36 : f32 to vector<1x128xf32>
    %98 = arith.subf %97, %79 : vector<1x128xf32>
    %99 = vector.broadcast %71 : vector<1x1xf32> to vector<1x128xf32>
    %100 = arith.mulf %80, %99 : vector<1x128xf32>
    %cst_37 = arith.constant 1.000000e+00 : f32
    %101 = vector.broadcast %cst_37 : f32 to vector<1x128xf32>
    %102 = arith.subf %101, %80 : vector<1x128xf32>
    %103 = vector.broadcast %57 : vector<1x1xf32> to vector<1x128xf32>
    %104 = arith.mulf %102, %103 : vector<1x128xf32>
    %105 = arith.addf %100, %104 : vector<1x128xf32>
    %106 = arith.mulf %98, %105 : vector<1x128xf32>
    %107 = arith.addf %96, %106 : vector<1x128xf32>
    %108 = arith.addf %88, %107 : vector<1x128xf32>
    %109 = arith.mulf %81, %108 : vector<1x128xf32>
    %cst_38 = arith.constant dense<0.000000e+00> : vector<1xf32>
    %110 = vector.multi_reduction <add>, %109, %cst_38 [1] : vector<1x128xf32> to vector<1xf32>
    %111 = vector.shape_cast %110 : vector<1xf32> to vector<1x1xf32>
    %112 = vector.shape_cast %28 : vector<1x1xf32> to vector<1x1xf32>
    %113 = vector.broadcast %112 : vector<1x1xf32> to vector<1x128xf32>
    %c0_39 = arith.constant 0 : index
    %c0_40 = arith.constant 0 : index
    %114 = vector.load %arg11[%c0_39, %c0_40] : memref<1x128xf32, #tpu.memory_space<vmem>>, vector<1x128xf32>
    tpu.vector_store %arg11[%c0_39, %c0_40], %113 {strides = array<i32>} : memref<1x128xf32, #tpu.memory_space<vmem>>, vector<1x128xf32>,
    %115 = vector.shape_cast %33 : vector<1x1xf32> to vector<1x1xf32>
    %116 = vector.broadcast %115 : vector<1x1xf32> to vector<1x128xf32>
    %c0_41 = arith.constant 0 : index
    %c0_42 = arith.constant 0 : index
    %117 = vector.load %arg12[%c0_41, %c0_42] : memref<1x128xf32, #tpu.memory_space<vmem>>, vector<1x128xf32>
    tpu.vector_store %arg12[%c0_41, %c0_42], %116 {strides = array<i32>} : memref<1x128xf32, #tpu.memory_space<vmem>>, vector<1x128xf32>,
    %118 = vector.shape_cast %111 : vector<1x1xf32> to vector<1x1xf32>
    %119 = vector.broadcast %118 : vector<1x1xf32> to vector<1x128xf32>
    %c0_43 = arith.constant 0 : index
    %c0_44 = arith.constant 0 : index
    %120 = vector.load %arg13[%c0_43, %c0_44] : memref<1x128xf32, #tpu.memory_space<vmem>>, vector<1x128xf32>
    tpu.vector_store %arg13[%c0_43, %c0_44], %119 {strides = array<i32>} : memref<1x128xf32, #tpu.memory_space<vmem>>, vector<1x128xf32>,
    return
  }
  func.func @transform_0(%arg0: i32) -> (i32, i32) {
    %c0_i32 = arith.constant 0 : i32
    %c0_i32_0 = arith.constant 0 : i32
    return %c0_i32, %arg0 : i32, i32
  }
  func.func @transform_1(%arg0: i32) -> (i32, i32) {
    %c0_i32 = arith.constant 0 : i32
    %c0_i32_0 = arith.constant 0 : i32
    return %c0_i32, %arg0 : i32, i32
  }
  func.func @transform_2(%arg0: i32) -> (i32, i32) {
    %c0_i32 = arith.constant 0 : i32
    %c0_i32_0 = arith.constant 0 : i32
    return %c0_i32, %arg0 : i32, i32
  }
  func.func @transform_3(%arg0: i32) -> (i32, i32) {
    %c0_i32 = arith.constant 0 : i32
    %c0_i32_0 = arith.constant 0 : i32
    return %c0_i32, %arg0 : i32, i32
  }
  func.func @transform_4(%arg0: i32) -> (i32, i32) {
    %c0_i32 = arith.constant 0 : i32
    %c0_i32_0 = arith.constant 0 : i32
    return %c0_i32, %arg0 : i32, i32
  }
  func.func @transform_5(%arg0: i32) -> (i32, i32) {
    %c0_i32 = arith.constant 0 : i32
    %c0_i32_0 = arith.constant 0 : i32
    return %c0_i32, %arg0 : i32, i32
  }
  func.func @transform_6(%arg0: i32) -> (i32, i32) {
    %c0_i32 = arith.constant 0 : i32
    %c0_i32_0 = arith.constant 0 : i32
    return %c0_i32, %arg0 : i32, i32
  }
  func.func @transform_7(%arg0: i32) -> (i32, i32) {
    %c0_i32 = arith.constant 0 : i32
    %c0_i32_0 = arith.constant 0 : i32
    %c0_i32_1 = arith.constant 0 : i32
    return %c0_i32, %c0_i32_0 : i32, i32
  }
  func.func @transform_8(%arg0: i32) -> (i32, i32) {
    %c0_i32 = arith.constant 0 : i32
    %c0_i32_0 = arith.constant 0 : i32
    %c0_i32_1 = arith.constant 0 : i32
    return %c0_i32, %c0_i32_0 : i32, i32
  }
  func.func @transform_9(%arg0: i32) -> (i32, i32) {
    %c0_i32 = arith.constant 0 : i32
    %c0_i32_0 = arith.constant 0 : i32
    %c0_i32_1 = arith.constant 0 : i32
    return %c0_i32, %c0_i32_0 : i32, i32
  }
  func.func @transform_10(%arg0: i32) -> (i32, i32) {
    %c0_i32 = arith.constant 0 : i32
    %c0_i32_0 = arith.constant 0 : i32
    return %c0_i32, %arg0 : i32, i32
  }
  func.func @transform_11(%arg0: i32) -> (i32, i32) {
    %c0_i32 = arith.constant 0 : i32
    %c0_i32_0 = arith.constant 0 : i32
    return %c0_i32, %arg0 : i32, i32
  }
  func.func @transform_12(%arg0: i32) -> (i32, i32) {
    %c0_i32 = arith.constant 0 : i32
    %c0_i32_0 = arith.constant 0 : i32
    return %c0_i32, %arg0 : i32, i32
  }
}

</mosaic_0001>

<llo_original>
// kernel: tpu_custom_call.1
$region0: #{tpu_custom_call.1}
  #allocation0 [shape = 'u32[]', space=smem, size = 0x4, offset = 0x4, fixed_abs, tag = 'smem constant byte address 0x4 - core index']
  #allocation1 [shape = 'u32[144,128]{1,0:T(1,128)}', space=vmem, size = 0x12000, scoped, tag = 'internal scratch']
  %s0 = inlined_call_operand.hbm [shape: f32[32,384], index: 0, kind: input, shape index: {}]
  %s1 = inlined_call_operand.hbm [shape: f32[32,384], index: 1, kind: input, shape index: {}]
  %s2 = inlined_call_operand.hbm [shape: f32[16,384], index: 2, kind: input, shape index: {}]
  %s3 = inlined_call_operand.hbm [shape: f32[16,384], index: 3, kind: input, shape index: {}]
  %s4 = inlined_call_operand.vmem [shape: f32[1,384], index: 4, kind: input, shape index: {}]
  %s5 = inlined_call_operand.vmem [shape: f32[1,384], index: 5, kind: input, shape index: {}]
  %s6 = inlined_call_operand.vmem [shape: f32[1,384], index: 6, kind: input, shape index: {}]
  %s7 = inlined_call_operand.vmem [shape: f32[2,16], index: 7, kind: input, shape index: {}]
  %s8 = inlined_call_operand.vmem [shape: f32[2,16], index: 8, kind: input, shape index: {}]
  %s9 = inlined_call_operand.vmem [shape: f32[2,16], index: 9, kind: input, shape index: {}]
  %s10 = inlined_call_operand.hbm [shape: f32[1,384], index: 10, kind: output, shape index: {0}]
  %s11 = inlined_call_operand.hbm [shape: f32[1,384], index: 11, kind: output, shape index: {1}]
  %s12 = inlined_call_operand.hbm [shape: f32[1,384], index: 12, kind: output, shape index: {2}]
  %13 = xla_tuple %s10, %s11, %s12
  %s14 = sld [smem:[#allocation0]]
  $region105: #{tpu_custom_call.1} parent=0
    _
  %s16 = ssub.s32 1, %s14
  %s17 = scalar_select 0, %s16, %s14
  $region1: #{tpu_custom_call.1} parent=0
    #allocation2 [shape = 'u8[32768]{0}', space=vmem, size = 0x8000, scoped, tag = 'input window, operand 0']
    #allocation3 [shape = 's32[2]{0}', space=sflag, size = 0x8, scoped, tag = 'scoped memory for tpu_custom_call.1']
    #allocation4 [shape = 's32[2]{0}', space=sflag, size = 0x8, scoped, tag = 'scoped memory for tpu_custom_call.1']
    #allocation5 [shape = 'u8[32768]{0}', space=vmem, size = 0x8000, scoped, tag = 'input window, operand 1']
    #allocation6 [shape = 's32[2]{0}', space=sflag, size = 0x8, scoped, tag = 'scoped memory for tpu_custom_call.1']
    #allocation7 [shape = 'u8[16384]{0}', space=vmem, size = 0x4000, scoped, tag = 'input window, operand 2']
    #allocation8 [shape = 'u8[16384]{0}', space=vmem, size = 0x4000, scoped, tag = 'input window, operand 3']
    #allocation9 [shape = 's32[2]{0}', space=sflag, size = 0x8, scoped, tag = 'scoped memory for tpu_custom_call.1']
    #allocation10 [shape = 'u8[1024]{0}', space=vmem, size = 0x400, scoped, tag = 'output window, operand 0']
    #allocation11 [shape = 'u8[1024]{0}', space=vmem, size = 0x400, scoped, tag = 'output window, operand 1']
    #allocation12 [shape = 's32[2]{0}', space=sflag, size = 0x8, scoped, tag = 'scoped memory for tpu_custom_call.1']
    #allocation13 [shape = 'u8[1024]{0}', space=vmem, size = 0x400, scoped, tag = 'output window, operand 2']
    %18 = vsyncpa [#allocation3], 0
    %s19 = scalar_lea.sflag [#allocation3], 1
    %20 = vsyncpa %s19, 0
    %21 = vsyncpa [#allocation6], 0
    %s22 = scalar_lea.sflag [#allocation6], 1
    %23 = vsyncpa %s22, 0
    %24 = vsyncpa [#allocation9], 0
    %s25 = scalar_lea.sflag [#allocation9], 1
    %26 = vsyncpa %s25, 0
    %27 = vsyncpa [#allocation4], 0
    %s28 = scalar_lea.sflag [#allocation4], 1
    %29 = vsyncpa %s28, 0
    %30 = vsyncpa [#allocation12], 0
    %s31 = scalar_lea.sflag [#allocation12], 1
    %32 = vsyncpa %s31, 0
    loop: start=0, step=1, limit=5
    $region2: #{tpu_custom_call.1} parent=1 // loop_pre_header
      _
    $region3: #{tpu_custom_call.1} parent=1 // loop_header
      %s34 = sphi 0, %s38
      %p35 = scmp.ge.s32.totalorder %s34, 5
      %s44 = sphi 0, %s46
      %s47 = sphi 0, %s44
      %s48 = sphi 0, %s47
      %s64 = sphi 0, %s48
      %s70 = sphi 0, %s72
      %s73 = sphi 0, %s70
      %s74 = sphi 0, %s73
      %s90 = sphi 0, %s74
      %s96 = sphi 0, %s98
      %s99 = sphi 0, %s96
      %s100 = sphi 0, %s99
      %s116 = sphi 0, %s100
      %s122 = sphi 0, %s124
      %s125 = sphi 0, %s122
      %s126 = sphi 0, %s125
      %s142 = sphi 0, %s126
      %s148 = sphi 0, %s150
      %s151 = sphi 0, %s148
      %s152 = sphi 0, %s151
      %s168 = sphi 0, %s152
      %s174 = sphi 0, %s176
      %s177 = sphi 0, %s174
      %s178 = sphi 0, %s177
      %s194 = sphi 0, %s178
      %s200 = sphi 0, %s202
      %s203 = sphi 0, %s200
      %s204 = sphi 0, %s203
      %s220 = sphi 0, %s204
      %s224 = sphi 0, %s224
      %s226 = sphi 0, %s224
      %s227 = sphi 0, %s226
      %s241 = sphi 0, %s227
      %s245 = sphi 0, %s245
      %s247 = sphi 0, %s245
      %s248 = sphi 0, %s247
      %s262 = sphi 0, %s248
      %s266 = sphi 0, %s266
      %s268 = sphi 0, %s266
      %s269 = sphi 0, %s268
      %s283 = sphi 0, %s269
      %s289 = sphi 0, %s291
      %s292 = sphi 0, %s289
      %s293 = sphi 0, %s292
      %s309 = sphi 0, %s293
      %s315 = sphi 0, %s317
      %s318 = sphi 0, %s315
      %s319 = sphi 0, %s318
      %s335 = sphi 0, %s319
      %s341 = sphi 0, %s343
      %s344 = sphi 0, %s341
      %s345 = sphi 0, %s344
      %s361 = sphi 0, %s345
    $region4: #{tpu_custom_call.1} parent=1 // loop_header_branch
      %37 = sbr.rel (%p35) target = $region8
    $region5: #{tpu_custom_call.1} parent=1 // loop_body
      %s39 = ssub.s32 %s34, 1
      %s40 = ssub.s32 %s34, 2
      %s41 = sadd.s32 %s34, 1
      %s42 = ssub.s32 %s34, %s41
      %p43 = scmp.eq.s32.totalorder %s42, 0
      %s45 = sadd.s32 %s44, 1
      %s46 = scalar_select %p43, %s44, %s45
      %p49 = pneg %p43
      %p50 = scmp.eq.s32.totalorder %s34, 2
      %p51 = por %p49, %p50
      %p52 = scmp.ne.s32.totalorder %s44, %s47
      %p53 = scmp.eq.s32.totalorder %s34, 0
      %p54 = por %p52, %p53
      %p55 = scmp.ne.s32.totalorder %s44, %s47
      %p56 = scmp.eq.s32.totalorder %s39, 2
      %p57 = por %p55, %p56
      %p58 = scmp.ne.s32.totalorder %s47, %s48
      %p59 = scmp.eq.s32.totalorder %s39, 0
      %p60 = por %p58, %p59
      %p61 = scmp.ne.s32.totalorder %s47, %s48
      %p62 = scmp.eq.s32.totalorder %s40, 2
      %p63 = por %p61, %p62
      %p65 = scmp.ne.s32.totalorder %s48, %s64
      %p66 = scmp.eq.s32.totalorder %s40, 0
      %p67 = por %p65, %p66
      %s68 = ssub.s32 %s34, %s41
      %p69 = scmp.eq.s32.totalorder %s68, 0
      %s71 = sadd.s32 %s70, 1
      %s72 = scalar_select %p69, %s70, %s71
      %p75 = pneg %p69
      %p76 = scmp.eq.s32.totalorder %s34, 2
      %p77 = por %p75, %p76
      %p78 = scmp.ne.s32.totalorder %s70, %s73
      %p79 = scmp.eq.s32.totalorder %s34, 0
      %p80 = por %p78, %p79
      %p81 = scmp.ne.s32.totalorder %s70, %s73
      %p82 = scmp.eq.s32.totalorder %s39, 2
      %p83 = por %p81, %p82
      %p84 = scmp.ne.s32.totalorder %s73, %s74
      %p85 = scmp.eq.s32.totalorder %s39, 0
      %p86 = por %p84, %p85
      %p87 = scmp.ne.s32.totalorder %s73, %s74
      %p88 = scmp.eq.s32.totalorder %s40, 2
      %p89 = por %p87, %p88
      %p91 = scmp.ne.s32.totalorder %s74, %s90
      %p92 = scmp.eq.s32.totalorder %s40, 0
      %p93 = por %p91, %p92
      %s94 = ssub.s32 %s34, %s41
      %p95 = scmp.eq.s32.totalorder %s94, 0
      %s97 = sadd.s32 %s96, 1
      %s98 = scalar_select %p95, %s96, %s97
      %p101 = pneg %p95
      %p102 = scmp.eq.s32.totalorder %s34, 2
      %p103 = por %p101, %p102
      %p104 = scmp.ne.s32.totalorder %s96, %s99
      %p105 = scmp.eq.s32.totalorder %s34, 0
      %p106 = por %p104, %p105
      %p107 = scmp.ne.s32.totalorder %s96, %s99
      %p108 = scmp.eq.s32.totalorder %s39, 2
      %p109 = por %p107, %p108
      %p110 = scmp.ne.s32.totalorder %s99, %s100
      %p111 = scmp.eq.s32.totalorder %s39, 0
      %p112 = por %p110, %p111
      %p113 = scmp.ne.s32.totalorder %s99, %s100
      %p114 = scmp.eq.s32.totalorder %s40, 2
      %p115 = por %p113, %p114
      %p117 = scmp.ne.s32.totalorder %s100, %s116
      %p118 = scmp.eq.s32.totalorder %s40, 0
      %p119 = por %p117, %p118
      %s120 = ssub.s32 %s34, %s41
      %p121 = scmp.eq.s32.totalorder %s120, 0
      %s123 = sadd.s32 %s122, 1
      %s124 = scalar_select %p121, %s122, %s123
      %p127 = pneg %p121
      %p128 = scmp.eq.s32.totalorder %s34, 2
      %p129 = por %p127, %p128
      %p130 = scmp.ne.s32.totalorder %s122, %s125
      %p131 = scmp.eq.s32.totalorder %s34, 0
      %p132 = por %p130, %p131
      %p133 = scmp.ne.s32.totalorder %s122, %s125
      %p134 = scmp.eq.s32.totalorder %s39, 2
      %p135 = por %p133, %p134
      %p136 = scmp.ne.s32.totalorder %s125, %s126
      %p137 = scmp.eq.s32.totalorder %s39, 0
      %p138 = por %p136, %p137
      %p139 = scmp.ne.s32.totalorder %s125, %s126
      %p140 = scmp.eq.s32.totalorder %s40, 2
      %p141 = por %p139, %p140
      %p143 = scmp.ne.s32.totalorder %s126, %s142
      %p144 = scmp.eq.s32.totalorder %s40, 0
      %p145 = por %p143, %p144
      %s146 = ssub.s32 %s34, %s41
      %p147 = scmp.eq.s32.totalorder %s146, 0
      %s149 = sadd.s32 %s148, 1
      %s150 = scalar_select %p147, %s148, %s149
      %p153 = pneg %p147
      %p154 = scmp.eq.s32.totalorder %s34, 2
      %p155 = por %p153, %p154
      %p156 = scmp.ne.s32.totalorder %s148, %s151
      %p157 = scmp.eq.s32.totalorder %s34, 0
      %p158 = por %p156, %p157
      %p159 = scmp.ne.s32.totalorder %s148, %s151
      %p160 = scmp.eq.s32.totalorder %s39, 2
      %p161 = por %p159, %p160
      %p162 = scmp.ne.s32.totalorder %s151, %s152
      %p163 = scmp.eq.s32.totalorder %s39, 0
      %p164 = por %p162, %p163
      %p165 = scmp.ne.s32.totalorder %s151, %s152
      %p166 = scmp.eq.s32.totalorder %s40, 2
      %p167 = por %p165, %p166
      %p169 = scmp.ne.s32.totalorder %s152, %s168
      %p170 = scmp.eq.s32.totalorder %s40, 0
      %p171 = por %p169, %p170
      %s172 = ssub.s32 %s34, %s41
      %p173 = scmp.eq.s32.totalorder %s172, 0
      %s175 = sadd.s32 %s174, 1
      %s176 = scalar_select %p173, %s174, %s175
      %p179 = pneg %p173
      %p180 = scmp.eq.s32.totalorder %s34, 2
      %p181 = por %p179, %p180
      %p182 = scmp.ne.s32.totalorder %s174, %s177
      %p183 = scmp.eq.s32.totalorder %s34, 0
      %p184 = por %p182, %p183
      %p185 = scmp.ne.s32.totalorder %s174, %s177
      %p186 = scmp.eq.s32.totalorder %s39, 2
      %p187 = por %p185, %p186
      %p188 = scmp.ne.s32.totalorder %s177, %s178
      %p189 = scmp.eq.s32.totalorder %s39, 0
      %p190 = por %p188, %p189
      %p191 = scmp.ne.s32.totalorder %s177, %s178
      %p192 = scmp.eq.s32.totalorder %s40, 2
      %p193 = por %p191, %p192
      %p195 = scmp.ne.s32.totalorder %s178, %s194
      %p196 = scmp.eq.s32.totalorder %s40, 0
      %p197 = por %p195, %p196
      %s198 = ssub.s32 %s34, %s41
      %p199 = scmp.eq.s32.totalorder %s198, 0
      %s201 = sadd.s32 %s200, 1
      %s202 = scalar_select %p199, %s200, %s201
      %p205 = pneg %p199
      %p206 = scmp.eq.s32.totalorder %s34, 2
      %p207 = por %p205, %p206
      %p208 = scmp.ne.s32.totalorder %s200, %s203
      %p209 = scmp.eq.s32.totalorder %s34, 0
      %p210 = por %p208, %p209
      %p211 = scmp.ne.s32.totalorder %s200, %s203
      %p212 = scmp.eq.s32.totalorder %s39, 2
      %p213 = por %p211, %p212
      %p214 = scmp.ne.s32.totalorder %s203, %s204
      %p215 = scmp.eq.s32.totalorder %s39, 0
      %p216 = por %p214, %p215
      %p217 = scmp.ne.s32.totalorder %s203, %s204
      %p218 = scmp.eq.s32.totalorder %s40, 2
      %p219 = por %p217, %p218
      %p221 = scmp.ne.s32.totalorder %s204, %s220
      %p222 = scmp.eq.s32.totalorder %s40, 0
      %p223 = por %p221, %p222
      %s225 = sadd.s32 %s224, 1
      %p228 = scmp.eq.s32.totalorder %s34, 2
      %p229 = scmp.ne.s32.totalorder %s224, %s226
      %p230 = scmp.eq.s32.totalorder %s34, 0
      %p231 = por %p229, %p230
      %p232 = scmp.ne.s32.totalorder %s224, %s226
      %p233 = scmp.eq.s32.totalorder %s39, 2
      %p234 = por %p232, %p233
      %p235 = scmp.ne.s32.totalorder %s226, %s227
      %p236 = scmp.eq.s32.totalorder %s39, 0
      %p237 = por %p235, %p236
      %p238 = scmp.ne.s32.totalorder %s226, %s227
      %p239 = scmp.eq.s32.totalorder %s40, 2
      %p240 = por %p238, %p239
      %p242 = scmp.ne.s32.totalorder %s227, %s241
      %p243 = scmp.eq.s32.totalorder %s40, 0
      %p244 = por %p242, %p243
      %s246 = sadd.s32 %s245, 1
      %p249 = scmp.eq.s32.totalorder %s34, 2
      %p250 = scmp.ne.s32.totalorder %s245, %s247
      %p251 = scmp.eq.s32.totalorder %s34, 0
      %p252 = por %p250, %p251
      %p253 = scmp.ne.s32.totalorder %s245, %s247
      %p254 = scmp.eq.s32.totalorder %s39, 2
      %p255 = por %p253, %p254
      %p256 = scmp.ne.s32.totalorder %s247, %s248
      %p257 = scmp.eq.s32.totalorder %s39, 0
      %p258 = por %p256, %p257
      %p259 = scmp.ne.s32.totalorder %s247, %s248
      %p260 = scmp.eq.s32.totalorder %s40, 2
      %p261 = por %p259, %p260
      %p263 = scmp.ne.s32.totalorder %s248, %s262
      %p264 = scmp.eq.s32.totalorder %s40, 0
      %p265 = por %p263, %p264
      %s267 = sadd.s32 %s266, 1
      %p270 = scmp.eq.s32.totalorder %s34, 2
      %p271 = scmp.ne.s32.totalorder %s266, %s268
      %p272 = scmp.eq.s32.totalorder %s34, 0
      %p273 = por %p271, %p272
      %p274 = scmp.ne.s32.totalorder %s266, %s268
      %p275 = scmp.eq.s32.totalorder %s39, 2
      %p276 = por %p274, %p275
      %p277 = scmp.ne.s32.totalorder %s268, %s269
      %p278 = scmp.eq.s32.totalorder %s39, 0
      %p279 = por %p277, %p278
      %p280 = scmp.ne.s32.totalorder %s268, %s269
      %p281 = scmp.eq.s32.totalorder %s40, 2
      %p282 = por %p280, %p281
      %p284 = scmp.ne.s32.totalorder %s269, %s283
      %p285 = scmp.eq.s32.totalorder %s40, 0
      %p286 = por %p284, %p285
      %s287 = ssub.s32 %s34, %s41
      %p288 = scmp.eq.s32.totalorder %s287, 0
      %s290 = sadd.s32 %s289, 1
      %s291 = scalar_select %p288, %s289, %s290
      %p294 = pneg %p288
      %p295 = scmp.eq.s32.totalorder %s34, 2
      %p296 = por %p294, %p295
      %p297 = scmp.ne.s32.totalorder %s289, %s292
      %p298 = scmp.eq.s32.totalorder %s34, 0
      %p299 = por %p297, %p298
      %p300 = scmp.ne.s32.totalorder %s289, %s292
      %p301 = scmp.eq.s32.totalorder %s39, 2
      %p302 = por %p300, %p301
      %p303 = scmp.ne.s32.totalorder %s292, %s293
      %p304 = scmp.eq.s32.totalorder %s39, 0
      %p305 = por %p303, %p304
      %p306 = scmp.ne.s32.totalorder %s292, %s293
      %p307 = scmp.eq.s32.totalorder %s40, 2
      %p308 = por %p306, %p307
      %p310 = scmp.ne.s32.totalorder %s293, %s309
      %p311 = scmp.eq.s32.totalorder %s40, 0
      %p312 = por %p310, %p311
      %s313 = ssub.s32 %s34, %s41
      %p314 = scmp.eq.s32.totalorder %s313, 0
      %s316 = sadd.s32 %s315, 1
      %s317 = scalar_select %p314, %s315, %s316
      %p320 = pneg %p314
      %p321 = scmp.eq.s32.totalorder %s34, 2
      %p322 = por %p320, %p321
      %p323 = scmp.ne.s32.totalorder %s315, %s318
      %p324 = scmp.eq.s32.totalorder %s34, 0
      %p325 = por %p323, %p324
      %p326 = scmp.ne.s32.totalorder %s315, %s318
      %p327 = scmp.eq.s32.totalorder %s39, 2
      %p328 = por %p326, %p327
      %p329 = scmp.ne.s32.totalorder %s318, %s319
      %p330 = scmp.eq.s32.totalorder %s39, 0
      %p331 = por %p329, %p330
      %p332 = scmp.ne.s32.totalorder %s318, %s319
      %p333 = scmp.eq.s32.totalorder %s40, 2
      %p334 = por %p332, %p333
      %p336 = scmp.ne.s32.totalorder %s319, %s335
      %p337 = scmp.eq.s32.totalorder %s40, 0
      %p338 = por %p336, %p337
      %s339 = ssub.s32 %s34, %s41
      %p340 = scmp.eq.s32.totalorder %s339, 0
      %s342 = sadd.s32 %s341, 1
      %s343 = scalar_select %p340, %s341, %s342
      %p346 = pneg %p340
      %p347 = scmp.eq.s32.totalorder %s34, 2
      %p348 = por %p346, %p347
      %p349 = scmp.ne.s32.totalorder %s341, %s344
      %p350 = scmp.eq.s32.totalorder %s34, 0
      %p351 = por %p349, %p350
      %p352 = scmp.ne.s32.totalorder %s341, %s344
      %p353 = scmp.eq.s32.totalorder %s39, 2
      %p354 = por %p352, %p353
      %p355 = scmp.ne.s32.totalorder %s344, %s345
      %p356 = scmp.eq.s32.totalorder %s39, 0
      %p357 = por %p355, %p356
      %p358 = scmp.ne.s32.totalorder %s344, %s345
      %p359 = scmp.eq.s32.totalorder %s40, 2
      %p360 = por %p358, %p359
      %p362 = scmp.ne.s32.totalorder %s345, %s361
      %p363 = scmp.eq.s32.totalorder %s40, 0
      %p364 = por %p362, %p363
      %p365 = scmp.le.s32.totalorder 1, %s34
      %p366 = scmp.lt.s32.totalorder %s34, 4
      %p367 = pnand %p365, %p366
      %p368 = pneg %p367
      // Predicated region
      $region9: #{tpu_custom_call.1} parent=5 // pred_check
        _
      $region10: #{tpu_custom_call.1} parent=5 // pred_check_branch
        %370 = sbr.rel (%p367) target = $region12
      $region11: #{tpu_custom_call.1} parent=5 // pred_region
        %s371 = ssub.s32 %s34, 1
        // Predicated region
        $region13: #{tpu_custom_call.1} parent=11 // pred_check
          %p372 = pneg %p237
        $region14: #{tpu_custom_call.1} parent=11 // pred_check_branch
          %374 = sbr.rel (%p372) target = $region16
        $region15: #{tpu_custom_call.1} parent=11 // pred_region
          _
        $region16: #{tpu_custom_call.1} parent=11 // pred_fallthru
          _
        // Predicated region
        $region17: #{tpu_custom_call.1} parent=11 // pred_check
          %p375 = pneg %p258
        $region18: #{tpu_custom_call.1} parent=11 // pred_check_branch
          %377 = sbr.rel (%p375) target = $region20
        $region19: #{tpu_custom_call.1} parent=11 // pred_region
          _
        $region20: #{tpu_custom_call.1} parent=11 // pred_fallthru
          _
        // Predicated region
        $region21: #{tpu_custom_call.1} parent=11 // pred_check
          %p378 = pneg %p279
        $region22: #{tpu_custom_call.1} parent=11 // pred_check_branch
          %380 = sbr.rel (%p378) target = $region24
        $region23: #{tpu_custom_call.1} parent=11 // pred_region
          _
        $region24: #{tpu_custom_call.1} parent=11 // pred_fallthru
          _
      $region12: #{tpu_custom_call.1} parent=5 // pred_fallthru
        _
      %p381 = scmp.lt.s32.totalorder %s34, 3
      // Predicated region
      $region25: #{tpu_custom_call.1} parent=5 // pred_check
        %p382 = pneg %p381
      $region26: #{tpu_custom_call.1} parent=5 // pred_check_branch
        %384 = sbr.rel (%p382) target = $region28
      $region27: #{tpu_custom_call.1} parent=5 // pred_region
        // Predicated region
        $region29: #{tpu_custom_call.1} parent=27 // pred_check
          %p385 = pneg %p54
        $region30: #{tpu_custom_call.1} parent=27 // pred_check_branch
          %387 = sbr.rel (%p385) target = $region32
        $region31: #{tpu_custom_call.1} parent=27 // pred_region
          %s388 = sand.u32 %s44, 1
          %s389 = scalar_lea.sflag [#allocation3], %s388
          %s390 = sand.u32 %s44, 1
          %s391 = smul.addr %s390, 32
          %s392 = scalar_lea.vmem [#allocation2], %s391
          %s394 = ssub.s32 512, 512
          %395 = vsyncadd %s389, %s394
          %s396 = smul.addr %s34, 128
          %s397 = scalar_lea.hbm %s0, %s396
          %s398 = sshll.u32 %s392, 4
          %s399 = int_to_ptr.vmem [resolvable:$true] %s398
          %404 = dma.hbm_to_vmem [thread:$0]  %s397, 512, %s399, %s389, 384, 128, 8
        $region32: #{tpu_custom_call.1} parent=27 // pred_fallthru
          _
        // Predicated region
        $region33: #{tpu_custom_call.1} parent=27 // pred_check
          %p405 = pneg %p80
        $region34: #{tpu_custom_call.1} parent=27 // pred_check_branch
          %407 = sbr.rel (%p405) target = $region36
        $region35: #{tpu_custom_call.1} parent=27 // pred_region
          %s408 = sand.u32 %s34, 1
          %s409 = scalar_lea.sflag [#allocation6], %s408
          %s410 = sand.u32 %s70, 1
          %s411 = smul.addr %s410, 32
          %s412 = scalar_lea.vmem [#allocation5], %s411
          %s414 = ssub.s32 512, 512
          %415 = vsyncadd %s409, %s414
          %s416 = smul.addr %s34, 128
          %s417 = scalar_lea.hbm %s1, %s416
          %s418 = sshll.u32 %s412, 4
          %s419 = int_to_ptr.vmem [resolvable:$true] %s418
          %424 = dma.hbm_to_vmem [thread:$0]  %s417, 512, %s419, %s409, 384, 128, 8
        $region36: #{tpu_custom_call.1} parent=27 // pred_fallthru
          _
        // Predicated region
        $region37: #{tpu_custom_call.1} parent=27 // pred_check
          %p425 = pneg %p106
        $region38: #{tpu_custom_call.1} parent=27 // pred_check_branch
          %427 = sbr.rel (%p425) target = $region40
        $region39: #{tpu_custom_call.1} parent=27 // pred_region
          %s428 = sand.u32 %s34, 1
          %s429 = scalar_lea.sflag [#allocation6], %s428
          %s430 = sand.u32 %s96, 1
          %s431 = smul.addr %s430, 16
          %s432 = scalar_lea.vmem [#allocation7], %s431
          %s434 = ssub.s32 256, 256
          %435 = vsyncadd %s429, %s434
          %s436 = smul.addr %s34, 128
          %s437 = scalar_lea.hbm %s2, %s436
          %s438 = sshll.u32 %s432, 4
          %s439 = int_to_ptr.vmem [resolvable:$true] %s438
          %444 = dma.hbm_to_vmem [thread:$0]  %s437, 256, %s439, %s429, 384, 128, 8
        $region40: #{tpu_custom_call.1} parent=27 // pred_fallthru
          _
        // Predicated region
        $region41: #{tpu_custom_call.1} parent=27 // pred_check
          %p445 = pneg %p132
        $region42: #{tpu_custom_call.1} parent=27 // pred_check_branch
          %447 = sbr.rel (%p445) target = $region44
        $region43: #{tpu_custom_call.1} parent=27 // pred_region
          %s448 = sand.u32 %s122, 1
          %s449 = scalar_lea.sflag [#allocation9], %s448
          %s450 = sand.u32 %s122, 1
          %s451 = smul.addr %s450, 16
          %s452 = scalar_lea.vmem [#allocation8], %s451
          %s454 = ssub.s32 256, 256
          %455 = vsyncadd %s449, %s454
          %s456 = smul.addr %s34, 128
          %s457 = scalar_lea.hbm %s3, %s456
          %s458 = sshll.u32 %s452, 4
          %s459 = int_to_ptr.vmem [resolvable:$true] %s458
          %464 = dma.hbm_to_vmem [thread:$0]  %s457, 256, %s459, %s449, 384, 128, 8
        $region44: #{tpu_custom_call.1} parent=27 // pred_fallthru
          _
        // Predicated region
        $region45: #{tpu_custom_call.1} parent=27 // pred_check
          %p465 = pneg %p158
        $region46: #{tpu_custom_call.1} parent=27 // pred_check_branch
          %467 = sbr.rel (%p465) target = $region48
        $region47: #{tpu_custom_call.1} parent=27 // pred_region
          %p468 = scmp.lt.s32.totalorder %s34, 2
          %s469 = scalar_select %p468, %s34, 2
          %s470 = scalar_lea.vmem %s4, %s469
        $region48: #{tpu_custom_call.1} parent=27 // pred_fallthru
          _
        // Predicated region
        $region49: #{tpu_custom_call.1} parent=27 // pred_check
          %p471 = pneg %p184
        $region50: #{tpu_custom_call.1} parent=27 // pred_check_branch
          %473 = sbr.rel (%p471) target = $region52
        $region51: #{tpu_custom_call.1} parent=27 // pred_region
          %p474 = scmp.lt.s32.totalorder %s34, 2
          %s475 = scalar_select %p474, %s34, 2
          %s476 = scalar_lea.vmem %s5, %s475
        $region52: #{tpu_custom_call.1} parent=27 // pred_fallthru
          _
        // Predicated region
        $region53: #{tpu_custom_call.1} parent=27 // pred_check
          %p477 = pneg %p210
        $region54: #{tpu_custom_call.1} parent=27 // pred_check_branch
          %479 = sbr.rel (%p477) target = $region56
        $region55: #{tpu_custom_call.1} parent=27 // pred_region
          %p480 = scmp.lt.s32.totalorder %s34, 2
          %s481 = scalar_select %p480, %s34, 2
          %s482 = scalar_lea.vmem %s6, %s481
        $region56: #{tpu_custom_call.1} parent=27 // pred_fallthru
          _
      $region28: #{tpu_custom_call.1} parent=5 // pred_fallthru
        _
      %p483 = scmp.le.s32.totalorder 1, %s34
      %p484 = scmp.lt.s32.totalorder %s34, 4
      %p485 = pnand %p483, %p484
      %p486 = pneg %p485
      // Predicated region
      $region57: #{tpu_custom_call.1} parent=5 // pred_check
        _
      $region58: #{tpu_custom_call.1} parent=5 // pred_check_branch
        %488 = sbr.rel (%p485) target = $region60
      $region59: #{tpu_custom_call.1} parent=5 // pred_region
        %s489 = ssub.s32 %s34, 1
        %s490 = sand.u32 %s47, 1
        %s491 = scalar_lea.sflag [#allocation3], %s490
        %s492 = sand.u32 %s47, 1
        %s493 = smul.addr %s492, 32
        %s494 = scalar_lea.vmem [#allocation2], %s493
        // Predicated region
        $region61: #{tpu_custom_call.1} parent=59 // pred_check
          %p495 = pneg %p60
        $region62: #{tpu_custom_call.1} parent=59 // pred_check_branch
          %497 = sbr.rel (%p495) target = $region64
        $region63: #{tpu_custom_call.1} parent=59 // pred_region
          %498 = dma.done %s491, 512
        $region64: #{tpu_custom_call.1} parent=59 // pred_fallthru
          _
        %s499 = sand.u32 %s39, 1
        %s500 = scalar_lea.sflag [#allocation6], %s499
        %s501 = sand.u32 %s73, 1
        %s502 = smul.addr %s501, 32
        %s503 = scalar_lea.vmem [#allocation5], %s502
        // Predicated region
        $region65: #{tpu_custom_call.1} parent=59 // pred_check
          %p504 = pneg %p86
        $region66: #{tpu_custom_call.1} parent=59 // pred_check_branch
          %506 = sbr.rel (%p504) target = $region68
        $region67: #{tpu_custom_call.1} parent=59 // pred_region
          %507 = dma.done %s500, 512
        $region68: #{tpu_custom_call.1} parent=59 // pred_fallthru
          _
        %s508 = sand.u32 %s39, 1
        %s509 = scalar_lea.sflag [#allocation6], %s508
        %s510 = sand.u32 %s99, 1
        %s511 = smul.addr %s510, 16
        %s512 = scalar_lea.vmem [#allocation7], %s511
        // Predicated region
        $region69: #{tpu_custom_call.1} parent=59 // pred_check
          %p513 = pneg %p112
        $region70: #{tpu_custom_call.1} parent=59 // pred_check_branch
          %515 = sbr.rel (%p513) target = $region72
        $region71: #{tpu_custom_call.1} parent=59 // pred_region
          %516 = dma.done %s509, 256
        $region72: #{tpu_custom_call.1} parent=59 // pred_fallthru
          _
        %s517 = sand.u32 %s125, 1
        %s518 = scalar_lea.sflag [#allocation9], %s517
        %s519 = sand.u32 %s125, 1
        %s520 = smul.addr %s519, 16
        %s521 = scalar_lea.vmem [#allocation8], %s520
        // Predicated region
        $region73: #{tpu_custom_call.1} parent=59 // pred_check
          %p522 = pneg %p138
        $region74: #{tpu_custom_call.1} parent=59 // pred_check_branch
          %524 = sbr.rel (%p522) target = $region76
        $region75: #{tpu_custom_call.1} parent=59 // pred_region
          %525 = dma.done %s518, 256
        $region76: #{tpu_custom_call.1} parent=59 // pred_fallthru
          _
        %s526 = sand.u32 %s47, 1
        %s527 = scalar_lea.sflag [#allocation3], %s526
        %s528 = sand.u32 %s47, 1
        %s529 = smul.addr %s528, 32
        %s530 = scalar_lea.vmem [#allocation2], %s529
        %p531 = pneg %p60
        %p532 = pneg %p57
        %s533 = sand.u32 %s39, 1
        %s534 = scalar_lea.sflag [#allocation6], %s533
        %s535 = sand.u32 %s73, 1
        %s536 = smul.addr %s535, 32
        %s537 = scalar_lea.vmem [#allocation5], %s536
        %p538 = pneg %p86
        %p539 = pneg %p83
        %s540 = sand.u32 %s39, 1
        %s541 = scalar_lea.sflag [#allocation6], %s540
        %s542 = sand.u32 %s99, 1
        %s543 = smul.addr %s542, 16
        %s544 = scalar_lea.vmem [#allocation7], %s543
        %p545 = pneg %p112
        %p546 = pneg %p109
        %s547 = sand.u32 %s125, 1
        %s548 = scalar_lea.sflag [#allocation9], %s547
        %s549 = sand.u32 %s125, 1
        %s550 = smul.addr %s549, 16
        %s551 = scalar_lea.vmem [#allocation8], %s550
        %p552 = pneg %p138
        %p553 = pneg %p135
        %p554 = scmp.lt.s32.totalorder %s39, 2
        %s555 = scalar_select %p554, %s39, 2
        %s556 = scalar_lea.vmem %s4, %s555
        %p557 = pneg %p164
        %p558 = pneg %p161
        %p559 = scmp.lt.s32.totalorder %s39, 2
        %s560 = scalar_select %p559, %s39, 2
        %s561 = scalar_lea.vmem %s5, %s560
        %p562 = pneg %p190
        %p563 = pneg %p187
        %p564 = scmp.lt.s32.totalorder %s39, 2
        %s565 = scalar_select %p564, %s39, 2
        %s566 = scalar_lea.vmem %s6, %s565
        %p567 = pneg %p216
        %p568 = pneg %p213
        %p569 = pneg %p237
        %p570 = pneg %p234
        %p571 = pneg %p258
        %p572 = pneg %p255
        %p573 = pneg %p279
        %p574 = pneg %p276
        %p575 = pneg %p305
        %p576 = pneg %p302
        %s577 = sand.u32 %s292, 1
        %s578 = scalar_lea.sflag [#allocation4], %s577
        %s579 = sand.u32 %s292, 1
        %s580 = scalar_lea.vmem [#allocation10], %s579
        %p581 = pneg %p331
        %p582 = pneg %p328
        %s583 = sand.u32 %s39, 1
        %s584 = scalar_lea.sflag [#allocation12], %s583
        %s585 = sand.u32 %s318, 1
        %s586 = scalar_lea.vmem [#allocation11], %s585
        %p587 = pneg %p357
        %p588 = pneg %p354
        %s589 = sand.u32 %s39, 1
        %s590 = scalar_lea.sflag [#allocation12], %s589
        %s591 = sand.u32 %s344, 1
        %s592 = scalar_lea.vmem [#allocation13], %s591
        %p593 = scmp.lt.s32.totalorder %s39, 2
        %s594 = scalar_select %p593, %s39, 2
        %s595 = scalar_lea.vmem %s4, %s594
        %p596 = scmp.lt.s32.totalorder %s39, 2
        %s597 = scalar_select %p596, %s39, 2
        %s598 = scalar_lea.vmem %s5, %s597
        %p599 = scmp.lt.s32.totalorder %s39, 2
        %s600 = scalar_select %p599, %s39, 2
        %s601 = scalar_lea.vmem %s6, %s600
        %v602 = vld [vmem:[%s494] sm:$0xff]
        %v603 = vld [vmem:[%s494 + $0x8] sm:$0xff]
        %v604 = vld [vmem:[%s494 + $0x10] sm:$0xff]
        %v605 = vld [vmem:[%s494 + $0x18] sm:$0xff]
        %v606 = vld [vmem:[%s503] sm:$0xff]
        %v607 = vld [vmem:[%s503 + $0x8] sm:$0xff]
        %v608 = vld [vmem:[%s503 + $0x10] sm:$0xff]
        %v609 = vld [vmem:[%s503 + $0x18] sm:$0xff]
        %v610 = vld [vmem:[%s512] sm:$0xff]
        %v611 = vld [vmem:[%s512 + $0x8] sm:$0xff]
        %v612 = vld [vmem:[%s521] sm:$0xff]
        %v613 = vld [vmem:[%s521 + $0x8] sm:$0xff]
        %v614 = vsub.f32 %v602, %v606
        %v615 = vsub.f32 %v603, %v607
        %v616 = vsub.f32 %v604, %v608
        %v617 = vsub.f32 %v605, %v609
        %v618 = vmul.f32 %v614, %v614
        %v619 = vmul.f32 %v615, %v615
        %v620 = vmul.f32 %v616, %v616
        %v621 = vmul.f32 %v617, %v617
        %v622 = vadd.f32 %v618, %v619
        %v623 = vadd.f32 %v622, %v620
        %v624 = vadd.f32 %v623, %v621
        %v625 = vrot.slane %v624, 4
        %v626 = vadd.f32 %v624, %v625
        %v627 = vrot.slane %v626, 2
        %v628 = vadd.f32 %v626, %v627
        %v629 = vrot.slane %v628, 1
        %v630 = vadd.f32 %v628, %v629
        %v631 = vrsqrt.pop %v630
        %v632 = vmul.f32 %v630, %v631
        %vm633 = vcmp.eq.f32.partialorder %v630, inf
        %v634 = vsel %vm633, %v630, %v632
        %vm635 = vcmp.eq.f32.partialorder %v630, 0.0
        %v636 = vand.u32 %v630, 2147483648
        %v637 = vsel %vm635, %v636, %v634
        %v638 = vsub.f32 %v610, %v612
        %v639 = vsub.f32 %v611, %v613
        %v640 = vmul.f32 %v638, %v638
        %v641 = vmul.f32 %v639, %v639
        %v642 = vadd.f32 %v640, %v641
        %v643 = vrot.slane %v642, 4
        %v644 = vadd.f32 %v642, %v643
        %v645 = vrot.slane %v644, 2
        %v646 = vadd.f32 %v644, %v645
        %v647 = vrot.slane %v646, 1
        %v648 = vadd.f32 %v646, %v647
        %v649 = vrsqrt.pop %v648
        %v650 = vmul.f32 %v648, %v649
        %vm651 = vcmp.eq.f32.partialorder %v648, inf
        %v652 = vsel %vm651, %v648, %v650
        %vm653 = vcmp.eq.f32.partialorder %v648, 0.0
        %v654 = vand.u32 %v648, 2147483648
        %v655 = vsel %vm653, %v654, %v652
        %vm656 = vcmp.gt.f32.partialorder %v637, 0.0
        %vm657 = vcmp.lt.f32.partialorder %v637, 0.8
        %vm658 = vmand %vm656, %vm657
        %v659 = vsel %vm658, %v637, 1.0
        %v660 = vsub.f32 %v655, %v637
        %v661 = vmul.f32 %v660, %v660
        %v662 = vrcp.pop %v659
        %v663 = vmul.f32 %v661, %v662
        %v664 = vsel %vm658, %v663, 0.0
        %665 = vadd.xlane.f32.xlu0 %v664
        %v666 = vpop.xlane.xlu0 %665
        %v667 = vsel %vm658, 1.0, 0.0
        %668 = vadd.xlane.f32.xlu0 %v667
        %v669 = vpop.xlane.xlu0 %668
        %v670 = vld [vmem:[%s7] sm:$0x3]
        %v671 = vld [vmem:[%s8] sm:$0x3]
        %v672 = vld [vmem:[%s9] sm:$0x3]
        %v673 = vsub.f32 %v670, %v672
        %v674 = vmul.f32 %v673, %v673
        %vm675 = vcmask 122880
        %v676 = vsel %vm675, %v674, 0.0
        %677 = vadd.xlane.f32.xlu0 %v676
        %v678 = vpop.xlane.xlu0 %677
        %v679 = vrsqrt.pop %v678
        %v680 = vmul.f32 %v678, %v679
        %vm681 = vcmp.eq.f32.partialorder %v678, inf
        %v682 = vsel %vm681, %v678, %v680
        %vm683 = vcmp.eq.f32.partialorder %v678, 0.0
        %v684 = vand.u32 %v678, 2147483648
        %v685 = vsel %vm683, %v684, %v682
        %vm686 = vcmask 123905
        %v687 = vsel %vm686, %v674, 0.0
        %688 = vadd.xlane.f32.xlu0 %v687
        %v689 = vpop.xlane.xlu0 %688
        %v690 = vrsqrt.pop %v689
        %v691 = vmul.f32 %v689, %v690
        %vm692 = vcmp.eq.f32.partialorder %v689, inf
        %v693 = vsel %vm692, %v689, %v691
        %vm694 = vcmp.eq.f32.partialorder %v689, 0.0
        %v695 = vand.u32 %v689, 2147483648
        %v696 = vsel %vm694, %v695, %v693
        %v697 = vsub.f32 %v671, %v672
        %v698 = vmul.f32 %v697, %v697
        %v699 = vsel %vm675, %v698, 0.0
        %700 = vadd.xlane.f32.xlu0 %v699
        %v701 = vpop.xlane.xlu0 %700
        %v702 = vrsqrt.pop %v701
        %v703 = vmul.f32 %v701, %v702
        %vm704 = vcmp.eq.f32.partialorder %v701, inf
        %v705 = vsel %vm704, %v701, %v703
        %vm706 = vcmp.eq.f32.partialorder %v701, 0.0
        %v707 = vand.u32 %v701, 2147483648
        %v708 = vsel %vm706, %v707, %v705
        %v709 = vsel %vm686, %v698, 0.0
        %710 = vadd.xlane.f32.xlu0 %v709
        %v711 = vpop.xlane.xlu0 %710
        %v712 = vrsqrt.pop %v711
        %v713 = vmul.f32 %v711, %v712
        %vm714 = vcmp.eq.f32.partialorder %v711, inf
        %v715 = vsel %vm714, %v711, %v713
        %vm716 = vcmp.eq.f32.partialorder %v711, 0.0
        %v717 = vand.u32 %v711, 2147483648
        %v718 = vsel %vm716, %v717, %v715
        %v720 = vrot.slane %v672, 1
        %v722 = vsub.f32 %v671, %v720
        %v723 = vmul.f32 %v722, %v722
        %v724 = vsel %vm675, %v723, 0.0
        %725 = vadd.xlane.f32.xlu0 %v724
        %v726 = vpop.xlane.xlu0 %725
        %v727 = vrsqrt.pop %v726
        %v728 = vmul.f32 %v726, %v727
        %vm729 = vcmp.eq.f32.partialorder %v726, inf
        %v730 = vsel %vm729, %v726, %v728
        %vm731 = vcmp.eq.f32.partialorder %v726, 0.0
        %v732 = vand.u32 %v726, 2147483648
        %v733 = vsel %vm731, %v732, %v730
        %v734 = vrot.slane %v672, 7
        %v736 = vsub.f32 %v671, %v734
        %v737 = vmul.f32 %v736, %v736
        %v738 = vsel %vm686, %v737, 0.0
        %739 = vadd.xlane.f32.xlu0 %v738
        %v740 = vpop.xlane.xlu0 %739
        %v741 = vrsqrt.pop %v740
        %v742 = vmul.f32 %v740, %v741
        %vm743 = vcmp.eq.f32.partialorder %v740, inf
        %v744 = vsel %vm743, %v740, %v742
        %vm745 = vcmp.eq.f32.partialorder %v740, 0.0
        %v746 = vand.u32 %v740, 2147483648
        %v747 = vsel %vm745, %v746, %v744
        %v748 = vld [vmem:[%s595] sm:$0x1]
        %v749 = vld [vmem:[%s598] sm:$0x1]
        %v750 = vld [vmem:[%s601] sm:$0x1]
        %v752 = vlaneseq
        %v753 = vshrl.u32 %v752, 7
        %v754 = vsub.s32 1, %v753
        %v755 = vrot.slane %v696, %v754
        %v757 = vmul.f32 %v748, %v755
        %v758 = vsub.f32 1.0, %v748
        %v759 = vmul.f32 %v758, %v685
        %v760 = vadd.f32 %v757, %v759
        %v762 = vlaneseq
        %v763 = vshrl.u32 %v762, 7
        %v764 = vsub.s32 1, %v763
        %v765 = vrot.slane %v718, %v764
        %v767 = vmul.f32 %v749, %v765
        %v768 = vsub.f32 1.0, %v749
        %v770 = vlaneseq
        %v771 = vshrl.u32 %v770, 7
        %v772 = vsub.s32 1, %v771
        %v773 = vrot.slane %v747, %v772
        %v775 = vmul.f32 %v768, %v773
        %v776 = vadd.f32 %v767, %v775
        %v777 = vmul.f32 %v748, %v776
        %v778 = vmul.f32 %v749, %v733
        %v779 = vmul.f32 %v768, %v708
        %v780 = vadd.f32 %v778, %v779
        %v781 = vmul.f32 %v758, %v780
        %v782 = vadd.f32 %v777, %v781
        %v783 = vadd.f32 %v760, %v782
        %v784 = vmul.f32 %v750, %v783
        %vm785 = vcmask 1040384
        %v786 = vsel %vm785, %v784, 0.0
        %787 = vadd.xlane.f32.xlu0 %v786
        %v788 = vpop.xlane.xlu0 %787
        %789 = vst [vmem:[%s580] sm:$0x1] %v666
        %790 = vst [vmem:[%s586] sm:$0x1] %v669
        %791 = vst [vmem:[%s592] sm:$0x1] %v788
        %s792 = sand.u32 %s292, 1
        %s793 = scalar_lea.sflag [#allocation4], %s792
        %s794 = sand.u32 %s292, 1
        %s795 = scalar_lea.vmem [#allocation10], %s794
        %s796 = sand.u32 %s39, 1
        %s797 = scalar_lea.sflag [#allocation12], %s796
        %s798 = sand.u32 %s318, 1
        %s799 = scalar_lea.vmem [#allocation11], %s798
        %s800 = sand.u32 %s39, 1
        %s801 = scalar_lea.sflag [#allocation12], %s800
        %s802 = sand.u32 %s344, 1
        %s803 = scalar_lea.vmem [#allocation13], %s802
        // Predicated region
        $region77: #{tpu_custom_call.1} parent=59 // pred_check
          %p804 = pneg %p302
        $region78: #{tpu_custom_call.1} parent=59 // pred_check_branch
          %806 = sbr.rel (%p804) target = $region80
        $region79: #{tpu_custom_call.1} parent=59 // pred_region
          %s808 = ssub.s32 16, 16
          %809 = vsyncadd %s793, %s808
          %s810 = smul.addr %s39, 16
          %s811 = scalar_lea.hbm %s10, %s810
          %s813 = sshll.u32 %s795, 4
          %s814 = int_to_ptr.vmem [resolvable:$true] %s813
          %816 = dma.vmem_to_hbm [thread:$0]  %s814, 16, %s811, %s793
        $region80: #{tpu_custom_call.1} parent=59 // pred_fallthru
          _
        // Predicated region
        $region81: #{tpu_custom_call.1} parent=59 // pred_check
          %p817 = pneg %p328
        $region82: #{tpu_custom_call.1} parent=59 // pred_check_branch
          %819 = sbr.rel (%p817) target = $region84
        $region83: #{tpu_custom_call.1} parent=59 // pred_region
          %s821 = ssub.s32 16, 16
          %822 = vsyncadd %s797, %s821
          %s823 = smul.addr %s39, 16
          %s824 = scalar_lea.hbm %s11, %s823
          %s826 = sshll.u32 %s799, 4
          %s827 = int_to_ptr.vmem [resolvable:$true] %s826
          %829 = dma.vmem_to_hbm [thread:$0]  %s827, 16, %s824, %s797
        $region84: #{tpu_custom_call.1} parent=59 // pred_fallthru
          _
        // Predicated region
        $region85: #{tpu_custom_call.1} parent=59 // pred_check
          %p830 = pneg %p354
        $region86: #{tpu_custom_call.1} parent=59 // pred_check_branch
          %832 = sbr.rel (%p830) target = $region88
        $region87: #{tpu_custom_call.1} parent=59 // pred_region
          %s834 = ssub.s32 16, 16
          %835 = vsyncadd %s801, %s834
          %s836 = smul.addr %s39, 16
          %s837 = scalar_lea.hbm %s12, %s836
          %s839 = sshll.u32 %s803, 4
          %s840 = int_to_ptr.vmem [resolvable:$true] %s839
          %842 = dma.vmem_to_hbm [thread:$0]  %s840, 16, %s837, %s801
        $region88: #{tpu_custom_call.1} parent=59 // pred_fallthru
          _
      $region60: #{tpu_custom_call.1} parent=5 // pred_fallthru
        _
      %p843 = scmp.le.s32.totalorder 2, %s34
      // Predicated region
      $region89: #{tpu_custom_call.1} parent=5 // pred_check
        %p844 = pneg %p843
      $region90: #{tpu_custom_call.1} parent=5 // pred_check_branch
        %846 = sbr.rel (%p844) target = $region92
      $region91: #{tpu_custom_call.1} parent=5 // pred_region
        %s847 = ssub.s32 %s34, 2
        // Predicated region
        $region93: #{tpu_custom_call.1} parent=91 // pred_check
          %p848 = pneg %p308
        $region94: #{tpu_custom_call.1} parent=91 // pred_check_branch
          %850 = sbr.rel (%p848) target = $region96
        $region95: #{tpu_custom_call.1} parent=91 // pred_region
          %s851 = sand.u32 %s293, 1
          %s852 = scalar_lea.sflag [#allocation4], %s851
          %s853 = sand.u32 %s293, 1
          %s854 = scalar_lea.vmem [#allocation10], %s853
          %855 = dma.done %s852, 16
        $region96: #{tpu_custom_call.1} parent=91 // pred_fallthru
          _
        // Predicated region
        $region97: #{tpu_custom_call.1} parent=91 // pred_check
          %p856 = pneg %p334
        $region98: #{tpu_custom_call.1} parent=91 // pred_check_branch
          %858 = sbr.rel (%p856) target = $region100
        $region99: #{tpu_custom_call.1} parent=91 // pred_region
          %s859 = sand.u32 %s40, 1
          %s860 = scalar_lea.sflag [#allocation12], %s859
          %s861 = sand.u32 %s319, 1
          %s862 = scalar_lea.vmem [#allocation11], %s861
          %863 = dma.done %s860, 16
        $region100: #{tpu_custom_call.1} parent=91 // pred_fallthru
          _
        // Predicated region
        $region101: #{tpu_custom_call.1} parent=91 // pred_check
          %p864 = pneg %p360
        $region102: #{tpu_custom_call.1} parent=91 // pred_check_branch
          %866 = sbr.rel (%p864) target = $region104
        $region103: #{tpu_custom_call.1} parent=91 // pred_region
          %s867 = sand.u32 %s40, 1
          %s868 = scalar_lea.sflag [#allocation12], %s867
          %s869 = sand.u32 %s345, 1
          %s870 = scalar_lea.vmem [#allocation13], %s869
          %871 = dma.done %s868, 16
        $region104: #{tpu_custom_call.1} parent=91 // pred_fallthru
          _
      $region92: #{tpu_custom_call.1} parent=5 // pred_fallthru
        _
    $region6: #{tpu_custom_call.1} parent=1 // loop_footer
      %s38 = sadd.s32 1, %s34
    $region7: #{tpu_custom_call.1} parent=1 // loop_footer_branch
      %33 = sbr.rel target = $region3
    $region8: #{tpu_custom_call.1} parent=1 // loop_exit
      _
    %872 = vsyncpa [#allocation3], 1
    %s873 = scalar_lea.sflag [#allocation3], 1
    %874 = vsyncpa %s873, 1
    %875 = vsyncpa [#allocation6], 1
    %s876 = scalar_lea.sflag [#allocation6], 1
    %877 = vsyncpa %s876, 1
    %878 = vsyncpa [#allocation9], 1
    %s879 = scalar_lea.sflag [#allocation9], 1
    %880 = vsyncpa %s879, 1
    %881 = vsyncpa [#allocation4], 1
    %s882 = scalar_lea.sflag [#allocation4], 1
    %883 = vsyncpa %s882, 1
    %884 = vsyncpa [#allocation12], 1
    %s885 = scalar_lea.sflag [#allocation12], 1
    %886 = vsyncpa %s885, 1

</llo_original>
